<compile_context>
chip_gen: v6e
topology: v6e:2x2x1
jax: 0.10.0
libtpu: 0.0.40
codegen_flags: <defaults>
</compile_context>

<pallas_src>
import numpy as np
import jax
import jax.numpy as jnp
from jax.experimental import pallas as pl
from jax.experimental.pallas import tpu as pltpu


def _round_up(x, m):
    return (x + m - 1) // m * m


def init_conv_kernel(w_ref, p_ref, s_ref, o_ref):
    # w_ref: (Cout, K1)  shared conv weights, bias folded in as last column
    # p_ref: (K1, St)    im2col patches for this spatial tile (last row = 1.0)
    # s_ref: (Cout, 1)   per-batch dropout3d channel scale
    # o_ref: (Cout, St)  output tile (channel-major -> lane-dense stores)
    acc = jnp.dot(w_ref[...], p_ref[...], preferred_element_type=jnp.float32)
    o_ref[...] = (acc * s_ref[...]).astype(o_ref.dtype)


def init_conv_pallas(x_ncdhw, weight, bias, drop_scale, *, spatial_tile=2048):
    """x_ncdhw: (N, Cin, D, H, W); weight: (Cout, Cin, 3, 3, 3); bias: (Cout,)
    drop_scale: (N, Cout) per-(batch, channel) dropout3d multiplier keep/(1-p).
    Returns (N, Cout, D, H, W)."""
    N, Cin, D, H, W = x_ncdhw.shape
    Cout = weight.shape[0]
    S = D * H * W
    K = 27 * Cin
    K1 = K + 1                                     # +1 row of ones for bias
    dtype = x_ncdhw.dtype

    # Pick a lane-dense spatial tile that divides the 128-rounded spatial size
    # (so the Sp pad disappears), capped by the requested tile size.
    S128 = _round_up(S, 128)
    st = max(min(spatial_tile, S128) // 128 * 128, 128)
    for cand in range(st, 0, -128):
        if S128 % cand == 0:
            st = cand
            break
    Sp = _round_up(S, st)

    # ---- glue (layout only): pad + im2col, done once, outside the kernel ----
    xp = jnp.pad(x_ncdhw, ((0, 0), (0, 0), (1, 1), (1, 1), (1, 1)))
    taps = []
    for kd in range(3):
        for kh in range(3):
            for kw in range(3):
                taps.append(
                    xp[:, :, kd:kd + D, kh:kh + H, kw:kw + W].reshape(N, Cin, S))
    patches = jnp.concatenate(taps, axis=1)                          # (N, K, S)
    ones = jnp.ones((N, 1, S), dtype)
    patches = jnp.concatenate([patches, ones], axis=1)               # (N, K1, S)
    patches = jnp.pad(patches, ((0, 0), (0, 0), (0, Sp - S)))        # (N, K1, Sp)

    # Shared weights (Cout, K1): tap-major / Cin-minor order matching patches,
    # with the bias as the last column (multiplied by the ones row).
    w2d = jnp.transpose(weight, (0, 2, 3, 4, 1)).reshape(Cout, K)
    w_aug = jnp.concatenate([w2d, bias.reshape(Cout, 1)], axis=1).astype(dtype)

    # Per-batch dropout3d channel scale, applied in the f32 epilogue.
    scale = drop_scale.reshape(N, Cout, 1).astype(jnp.float32)

    grid = (N, Sp // st)

    out = pl.pallas_call(
        init_conv_kernel,
        out_shape=jax.ShapeDtypeStruct((N, Cout, Sp), dtype),
        grid_spec=pltpu.PrefetchScalarGridSpec(
            num_scalar_prefetch=0,
            grid=grid,
            in_specs=[
                # Constant block index -> weights DMA'd once for the whole grid.
                pl.BlockSpec((Cout, K1), lambda n, s: (0, 0)),
                pl.BlockSpec((None, K1, st), lambda n, s: (n, 0, s)),
                pl.BlockSpec((None, Cout, 1), lambda n, s: (n, 0, 0)),
            ],
            out_specs=pl.BlockSpec((None, Cout, st), lambda n, s: (n, 0, s)),
        ),
        compiler_params=pltpu.CompilerParams(
            dimension_semantics=("parallel", "parallel")),
    )(w_aug, patches, scale)

    # (N, Cout, S) is already channel-major: reshape is NCDHW, no transpose.
    out = out[:, :, :S].reshape(N, Cout, D, H, W)
    return out


if __name__ == "__main__":
    N, Cin, Cout, D, H, W = 2, 4, 16, 8, 8, 8
    p = 0.2

    key = jax.random.PRNGKey(0)
    kx, kw, kb, kd = jax.random.split(key, 4)

    x = jax.random.normal(kx, (N, Cin, D, H, W), jnp.float32)

    # Deterministic param init (PyTorch Conv3d default: U(-1/sqrt(fan_in), +)).
    fan_in = Cin * 3 * 3 * 3
    bound = 1.0 / np.sqrt(fan_in)
    weight = jax.random.uniform(kw, (Cout, Cin, 3, 3, 3), jnp.float32,
                                -bound, bound)
    bias = jax.random.uniform(kb, (Cout,), jnp.float32, -bound, bound)

    # F.dropout3d (training=True default): drop whole channels per (n, c).
    # TODO(synk): dropout mask RNG uses jax.random in the wrapper (not the
    # torch RNG stream / pltpu.prng_*); the mask application itself is fused
    # into the kernel as the per-batch epilogue channel scale.
    keep = jax.random.bernoulli(kd, 1.0 - p, (N, Cout)).astype(jnp.float32)
    drop_scale = keep / (1.0 - p)                                   # (N, Cout)

    out = init_conv_pallas(x, weight, bias, drop_scale)
    out = jax.block_until_ready(out)

    # Reference check with XLA's conv (same dropout mask applied).
    ref = jax.lax.conv_general_dilated(
        x, weight, window_strides=(1, 1, 1),
        padding=((1, 1), (1, 1), (1, 1)),
        dimension_numbers=("NCDHW", "OIDHW", "NCDHW"))
    ref = ref + bias.reshape(1, Cout, 1, 1, 1)
    ref = ref * drop_scale.reshape(N, Cout, 1, 1, 1)

    assert out.shape == (N, Cout, D, H, W)
    np.testing.assert_allclose(np.asarray(out), np.asarray(ref),
                               rtol=1e-4, atol=1e-4)
    print("KERNEL_OK")
</pallas_src>

<mosaic_0001>
module attributes {stable_mosaic.version = 11 : i64} {
  func.func @init_conv_kernel(%arg0: i32, %arg1: i32, %arg2: memref<16x109xf32, #tpu.memory_space<vmem>>, %arg3: memref<1x109x512xf32, #tpu.memory_space<vmem>>, %arg4: memref<1x16x1xf32, #tpu.memory_space<vmem>>, %arg5: memref<1x16x512xf32, #tpu.memory_space<vmem>>) attributes {dimension_semantics = [#tpu.dimension_semantics<parallel>, #tpu.dimension_semantics<parallel>], iteration_bounds = array<i64: 2, 1>, scalar_prefetch = 0 : i64, scratch_operands = 0 : i64, tpu.core_type = #tpu.core_type<tc>, window_params = [{pipeline_mode = #tpu.pipeline_mode<synchronous>, transform_indices = @transform_0, window_bounds = array<i64: 16, 109>}, {transform_indices = @transform_1, window_bounds = array<i64: 1, 109, 512>}, {transform_indices = @transform_2, window_bounds = array<i64: 1, 16, 1>}, {transform_indices = @transform_3, window_bounds = array<i64: 1, 16, 512>}]} {
    %c0 = arith.constant 0 : index
    %c0_0 = arith.constant 0 : index
    %0 = vector.load %arg2[%c0, %c0_0] : memref<16x109xf32, #tpu.memory_space<vmem>>, vector<16x109xf32>
    %c0_1 = arith.constant 0 : index
    %c0_2 = arith.constant 0 : index
    %c0_3 = arith.constant 0 : index
    %1 = vector.load %arg3[%c0_1, %c0_2, %c0_3] : memref<1x109x512xf32, #tpu.memory_space<vmem>>, vector<1x109x512xf32>
    %2 = vector.shape_cast %1 : vector<1x109x512xf32> to vector<109x512xf32>
    %cst = arith.constant dense<0.000000e+00> : vector<16x512xf32>
    %3 = tpu.matmul %0, %2, %cst {dimension_numbers = #tpu.dot_dimension_numbers<[1], [0], [0], [1], [0, 0, 1, 1], [], []>} : vector<16x109xf32>, vector<109x512xf32>, vector<16x512xf32> -> vector<16x512xf32>
    %c0_4 = arith.constant 0 : index
    %c0_5 = arith.constant 0 : index
    %c0_6 = arith.constant 0 : index
    %4 = vector.load %arg4[%c0_4, %c0_5, %c0_6] : memref<1x16x1xf32, #tpu.memory_space<vmem>>, vector<1x16x1xf32>
    %5 = vector.shape_cast %4 : vector<1x16x1xf32> to vector<16x1xf32>
    %6 = vector.broadcast %5 : vector<16x1xf32> to vector<16x512xf32>
    %7 = arith.mulf %3, %6 : vector<16x512xf32>
    %c0_7 = arith.constant 0 : index
    %c0_8 = arith.constant 0 : index
    %c0_9 = arith.constant 0 : index
    %8 = vector.load %arg5[%c0_7, %c0_8, %c0_9] : memref<1x16x512xf32, #tpu.memory_space<vmem>>, vector<1x16x512xf32>
    %9 = vector.shape_cast %8 : vector<1x16x512xf32> to vector<16x512xf32>
    %10 = vector.shape_cast %7 : vector<16x512xf32> to vector<1x16x512xf32>
    tpu.vector_store %arg5[%c0_7, %c0_8, %c0_9], %10 {strides = array<i32>} : memref<1x16x512xf32, #tpu.memory_space<vmem>>, vector<1x16x512xf32>,
    return
  }
  func.func @transform_0(%arg0: i32, %arg1: i32) -> (i32, i32) {
    %c0_i32 = arith.constant 0 : i32
    %c0_i32_0 = arith.constant 0 : i32
    %c0_i32_1 = arith.constant 0 : i32
    return %c0_i32, %c0_i32_0 : i32, i32
  }
  func.func @transform_1(%arg0: i32, %arg1: i32) -> (i32, i32, i32) {
    %c0_i32 = arith.constant 0 : i32
    %c0_i32_0 = arith.constant 0 : i32
    return %arg0, %c0_i32, %arg1 : i32, i32, i32
  }
  func.func @transform_2(%arg0: i32, %arg1: i32) -> (i32, i32, i32) {
    %c0_i32 = arith.constant 0 : i32
    %c0_i32_0 = arith.constant 0 : i32
    %c0_i32_1 = arith.constant 0 : i32
    return %arg0, %c0_i32, %c0_i32_0 : i32, i32, i32
  }
  func.func @transform_3(%arg0: i32, %arg1: i32) -> (i32, i32, i32) {
    %c0_i32 = arith.constant 0 : i32
    %c0_i32_0 = arith.constant 0 : i32
    return %arg0, %c0_i32, %arg1 : i32, i32, i32
  }
}

</mosaic_0001>

<llo_original>
// kernel: tpu_custom_call.1
$region0: #{tpu_custom_call.1}
  #allocation0 [shape = 'u32[]', space=smem, size = 0x4, offset = 0x4, fixed_abs, tag = 'smem constant byte address 0x4 - core index']
  #allocation1 [shape = 'u32[144,128]{1,0:T(1,128)}', space=vmem, size = 0x12000, scoped, tag = 'internal scratch']
  %s0 = inlined_call_operand.vmem [shape: f32[16,109], index: 0, kind: input, shape index: {}]
  %s1 = inlined_call_operand.vmem [shape: f32[2,109,512], index: 1, kind: input, shape index: {}]
  %s2 = inlined_call_operand.vmem [shape: f32[2,16,1], index: 2, kind: input, shape index: {}]
  %s3 = inlined_call_operand.hbm [shape: f32[2,16,512], index: 3, kind: output, shape index: {}]
  %s4 = sld [smem:[#allocation0]]
  $region45: #{tpu_custom_call.1} parent=0
    _
  %s6 = ssub.s32 1, %s4
  %s7 = scalar_select 0, %s6, %s4
  $region1: #{tpu_custom_call.1} parent=0
    #allocation2 [shape = 'u8[65536]{0}', space=vmem, size = 0x10000, scoped, tag = 'output window, operand 0']
    #allocation3 [shape = 's32[2]{0}', space=sflag, size = 0x8, scoped, tag = 'scoped memory for tpu_custom_call.1']
    %8 = vsyncpa [#allocation3], 0
    %s9 = scalar_lea.sflag [#allocation3], 1
    %10 = vsyncpa %s9, 0
    loop: start=0, step=1, limit=4
    $region2: #{tpu_custom_call.1} parent=1 // loop_pre_header
      _
    $region3: #{tpu_custom_call.1} parent=1 // loop_header
      %s12 = sphi 0, %s16
      %p13 = scmp.ge.s32.totalorder %s12, 4
      %s19 = sphi 0, %s31
      %s20 = sphi 0, %s27
      %s21 = sphi 0, %s19
      %s22 = sphi 0, %s20
      %s23 = sphi 0, %s21
      %s24 = sphi 0, %s22
      %s32 = sphi 0, %s32
      %s34 = sphi 0, %s32
      %s35 = sphi 0, %s34
      %s49 = sphi 0, %s35
      %s57 = sphi 0, %s59
      %s60 = sphi 0, %s57
      %s61 = sphi 0, %s60
      %s77 = sphi 0, %s61
      %s83 = sphi 0, %s85
      %s86 = sphi 0, %s83
      %s87 = sphi 0, %s86
      %s103 = sphi 0, %s87
      %s111 = sphi 0, %s113
      %s114 = sphi 0, %s111
      %s115 = sphi 0, %s114
      %s131 = sphi 0, %s115
    $region4: #{tpu_custom_call.1} parent=1 // loop_header_branch
      %15 = sbr.rel (%p13) target = $region8
    $region5: #{tpu_custom_call.1} parent=1 // loop_body
      %s17 = ssub.s32 %s12, 1
      %s18 = ssub.s32 %s12, 2
      %s25 = sadd.s32 1, %s20
      %p26 = scmp.ge.s32.totalorder %s25, 1
      %s27 = scalar_select %p26, 0, %s25
      %s28 = sadd.s32 1, %s19
      %s29 = scalar_select %p26, %s28, %s19
      %p30 = scmp.ge.s32.totalorder %s29, 2
      %s31 = scalar_select %p30, 0, %s29
      %s33 = sadd.s32 %s32, 1
      %p36 = scmp.eq.s32.totalorder %s12, 1
      %p37 = scmp.ne.s32.totalorder %s32, %s34
      %p38 = scmp.eq.s32.totalorder %s12, 0
      %p39 = por %p37, %p38
      %p40 = scmp.ne.s32.totalorder %s32, %s34
      %p41 = scmp.eq.s32.totalorder %s17, 1
      %p42 = por %p40, %p41
      %p43 = scmp.ne.s32.totalorder %s34, %s35
      %p44 = scmp.eq.s32.totalorder %s17, 0
      %p45 = por %p43, %p44
      %p46 = scmp.ne.s32.totalorder %s34, %s35
      %p47 = scmp.eq.s32.totalorder %s18, 1
      %p48 = por %p46, %p47
      %p50 = scmp.ne.s32.totalorder %s35, %s49
      %p51 = scmp.eq.s32.totalorder %s18, 0
      %p52 = por %p50, %p51
      %s53 = ssub.s32 %s19, %s31
      %s54 = ssub.s32 %s20, %s27
      %s55 = sor.u32 %s53, %s54
      %p56 = scmp.eq.s32.totalorder %s55, 0
      %s58 = sadd.s32 %s57, 1
      %s59 = scalar_select %p56, %s57, %s58
      %p62 = pneg %p56
      %p63 = scmp.eq.s32.totalorder %s12, 1
      %p64 = por %p62, %p63
      %p65 = scmp.ne.s32.totalorder %s57, %s60
      %p66 = scmp.eq.s32.totalorder %s12, 0
      %p67 = por %p65, %p66
      %p68 = scmp.ne.s32.totalorder %s57, %s60
      %p69 = scmp.eq.s32.totalorder %s17, 1
      %p70 = por %p68, %p69
      %p71 = scmp.ne.s32.totalorder %s60, %s61
      %p72 = scmp.eq.s32.totalorder %s17, 0
      %p73 = por %p71, %p72
      %p74 = scmp.ne.s32.totalorder %s60, %s61
      %p75 = scmp.eq.s32.totalorder %s18, 1
      %p76 = por %p74, %p75
      %p78 = scmp.ne.s32.totalorder %s61, %s77
      %p79 = scmp.eq.s32.totalorder %s18, 0
      %p80 = por %p78, %p79
      %s81 = ssub.s32 %s19, %s31
      %p82 = scmp.eq.s32.totalorder %s81, 0
      %s84 = sadd.s32 %s83, 1
      %s85 = scalar_select %p82, %s83, %s84
      %p88 = pneg %p82
      %p89 = scmp.eq.s32.totalorder %s12, 1
      %p90 = por %p88, %p89
      %p91 = scmp.ne.s32.totalorder %s83, %s86
      %p92 = scmp.eq.s32.totalorder %s12, 0
      %p93 = por %p91, %p92
      %p94 = scmp.ne.s32.totalorder %s83, %s86
      %p95 = scmp.eq.s32.totalorder %s17, 1
      %p96 = por %p94, %p95
      %p97 = scmp.ne.s32.totalorder %s86, %s87
      %p98 = scmp.eq.s32.totalorder %s17, 0
      %p99 = por %p97, %p98
      %p100 = scmp.ne.s32.totalorder %s86, %s87
      %p101 = scmp.eq.s32.totalorder %s18, 1
      %p102 = por %p100, %p101
      %p104 = scmp.ne.s32.totalorder %s87, %s103
      %p105 = scmp.eq.s32.totalorder %s18, 0
      %p106 = por %p104, %p105
      %s107 = ssub.s32 %s19, %s31
      %s108 = ssub.s32 %s20, %s27
      %s109 = sor.u32 %s107, %s108
      %p110 = scmp.eq.s32.totalorder %s109, 0
      %s112 = sadd.s32 %s111, 1
      %s113 = scalar_select %p110, %s111, %s112
      %p116 = pneg %p110
      %p117 = scmp.eq.s32.totalorder %s12, 1
      %p118 = por %p116, %p117
      %p119 = scmp.ne.s32.totalorder %s111, %s114
      %p120 = scmp.eq.s32.totalorder %s12, 0
      %p121 = por %p119, %p120
      %p122 = scmp.ne.s32.totalorder %s111, %s114
      %p123 = scmp.eq.s32.totalorder %s17, 1
      %p124 = por %p122, %p123
      %p125 = scmp.ne.s32.totalorder %s114, %s115
      %p126 = scmp.eq.s32.totalorder %s17, 0
      %p127 = por %p125, %p126
      %p128 = scmp.ne.s32.totalorder %s114, %s115
      %p129 = scmp.eq.s32.totalorder %s18, 1
      %p130 = por %p128, %p129
      %p132 = scmp.ne.s32.totalorder %s115, %s131
      %p133 = scmp.eq.s32.totalorder %s18, 0
      %p134 = por %p132, %p133
      %p135 = scmp.le.s32.totalorder 1, %s12
      %p136 = scmp.lt.s32.totalorder %s12, 3
      %p137 = pnand %p135, %p136
      %p138 = pneg %p137
      // Predicated region
      $region9: #{tpu_custom_call.1} parent=5 // pred_check
        _
      $region10: #{tpu_custom_call.1} parent=5 // pred_check_branch
        %140 = sbr.rel (%p137) target = $region12
      $region11: #{tpu_custom_call.1} parent=5 // pred_region
        %s141 = ssub.s32 %s12, 1
        // Predicated region
        $region13: #{tpu_custom_call.1} parent=11 // pred_check
          %p142 = pneg %p45
        $region14: #{tpu_custom_call.1} parent=11 // pred_check_branch
          %144 = sbr.rel (%p142) target = $region16
        $region15: #{tpu_custom_call.1} parent=11 // pred_region
          _
        $region16: #{tpu_custom_call.1} parent=11 // pred_fallthru
          _
      $region12: #{tpu_custom_call.1} parent=5 // pred_fallthru
        _
      %p145 = scmp.lt.s32.totalorder %s12, 2
      // Predicated region
      $region17: #{tpu_custom_call.1} parent=5 // pred_check
        %p146 = pneg %p145
      $region18: #{tpu_custom_call.1} parent=5 // pred_check_branch
        %148 = sbr.rel (%p146) target = $region20
      $region19: #{tpu_custom_call.1} parent=5 // pred_region
        // Predicated region
        $region21: #{tpu_custom_call.1} parent=19 // pred_check
          %p149 = pneg %p67
        $region22: #{tpu_custom_call.1} parent=19 // pred_check_branch
          %151 = sbr.rel (%p149) target = $region24
        $region23: #{tpu_custom_call.1} parent=19 // pred_region
          %s152 = smul.u32 4, %s20
          %p153 = scmp.lt.s32.totalorder %s19, 1
          %s154 = scalar_select %p153, %s19, 1
          %p155 = scmp.lt.s32.totalorder %s152, 3
          %s156 = scalar_select %p155, %s152, 3
          %s157 = smul.addr %s154, 56
          %s158 = sadd.s32 %s156, %s157
          %s159 = smul.addr %s158, 8
          %s160 = scalar_lea.vmem %s1, %s159
          %s161 = smul.u32 4, %s20
        $region24: #{tpu_custom_call.1} parent=19 // pred_fallthru
          _
        // Predicated region
        $region25: #{tpu_custom_call.1} parent=19 // pred_check
          %p162 = pneg %p93
        $region26: #{tpu_custom_call.1} parent=19 // pred_check_branch
          %164 = sbr.rel (%p162) target = $region28
        $region27: #{tpu_custom_call.1} parent=19 // pred_region
          %p165 = scmp.lt.s32.totalorder %s19, 1
          %s166 = scalar_select %p165, %s19, 1
          %s167 = smul.addr %s166, 2
          %s168 = smul.addr %s167, 8
          %s169 = scalar_lea.vmem %s2, %s168
        $region28: #{tpu_custom_call.1} parent=19 // pred_fallthru
          _
      $region20: #{tpu_custom_call.1} parent=5 // pred_fallthru
        _
      %p170 = scmp.le.s32.totalorder 1, %s12
      %p171 = scmp.lt.s32.totalorder %s12, 3
      %p172 = pnand %p170, %p171
      %p173 = pneg %p172
      // Predicated region
      $region29: #{tpu_custom_call.1} parent=5 // pred_check
        _
      $region30: #{tpu_custom_call.1} parent=5 // pred_check_branch
        %175 = sbr.rel (%p172) target = $region32
      $region31: #{tpu_custom_call.1} parent=5 // pred_region
        %s176 = ssub.s32 %s12, 1
        %p177 = pneg %p45
        %p178 = pneg %p42
        %s179 = smul.u32 4, %s22
        %p180 = scmp.lt.s32.totalorder %s21, 1
        %s181 = scalar_select %p180, %s21, 1
        %p182 = scmp.lt.s32.totalorder %s179, 3
        %s183 = scalar_select %p182, %s179, 3
        %s184 = smul.addr %s181, 56
        %s185 = sadd.s32 %s183, %s184
        %s186 = smul.addr %s185, 8
        %s187 = scalar_lea.vmem %s1, %s186
        %p188 = pneg %p73
        %p189 = pneg %p70
        %p190 = scmp.lt.s32.totalorder %s21, 1
        %s191 = scalar_select %p190, %s21, 1
        %s192 = smul.addr %s191, 2
        %s193 = smul.addr %s192, 8
        %s194 = scalar_lea.vmem %s2, %s193
        %p195 = pneg %p99
        %p196 = pneg %p96
        %p197 = pneg %p127
        %p198 = pneg %p124
        %s199 = sand.u32 %s114, 1
        %s200 = scalar_lea.sflag [#allocation3], %s199
        %s201 = sand.u32 %s114, 1
        %s202 = smul.addr %s201, 64
        %s203 = scalar_lea.vmem [#allocation2], %s202
        %s204 = smul.u32 4, %s22
        %p205 = scmp.lt.s32.totalorder %s21, 1
        %s206 = scalar_select %p205, %s21, 1
        %p207 = scmp.lt.s32.totalorder %s204, 3
        %s208 = scalar_select %p207, %s204, 3
        %s209 = smul.addr %s206, 56
        %s210 = sadd.s32 %s208, %s209
        %s211 = smul.addr %s210, 8
        %s212 = scalar_lea.vmem %s1, %s211
        %s213 = smul.u32 4, %s22
        %p214 = scmp.lt.s32.totalorder %s21, 1
        %s215 = scalar_select %p214, %s21, 1
        %s216 = smul.addr %s215, 2
        %s217 = smul.addr %s216, 8
        %s218 = scalar_lea.vmem %s2, %s217
        %s219 = smul.u32 4, %s22
        %v220 = vld [vmem:[%s0] sm:$0xff]
        %v221 = vld [vmem:[%s0 + $0x8] sm:$0xff]
        %v222 = vld [vmem:[%s212] sm:$0xff]
        %v223 = vld [vmem:[%s212 + $0x8] sm:$0xff]
        %v224 = vld [vmem:[%s212 + $0x10] sm:$0xff]
        %v225 = vld [vmem:[%s212 + $0x18] sm:$0xff]
        %v226 = vld [vmem:[%s212 + $0x20] sm:$0xff]
        %v227 = vld [vmem:[%s212 + $0x28] sm:$0xff]
        %v228 = vld [vmem:[%s212 + $0x30] sm:$0xff]
        %v229 = vld [vmem:[%s212 + $0x38] sm:$0xff]
        %v230 = vld [vmem:[%s212 + $0x40] sm:$0xff]
        %v231 = vld [vmem:[%s212 + $0x48] sm:$0xff]
        %v232 = vld [vmem:[%s212 + $0x50] sm:$0xff]
        %v233 = vld [vmem:[%s212 + $0x58] sm:$0xff]
        %v234 = vld [vmem:[%s212 + $0x60] sm:$0xff]
        %v235 = vld [vmem:[%s212 + $0x68] sm:$0xff]
        %v236 = vld [vmem:[%s212 + $0x70] sm:$0xff]
        %v237 = vld [vmem:[%s212 + $0x78] sm:$0xff]
        %v238 = vld [vmem:[%s212 + $0x80] sm:$0xff]
        %v239 = vld [vmem:[%s212 + $0x88] sm:$0xff]
        %v240 = vld [vmem:[%s212 + $0x90] sm:$0xff]
        %v241 = vld [vmem:[%s212 + $0x98] sm:$0xff]
        %v242 = vld [vmem:[%s212 + $0xa0] sm:$0xff]
        %v243 = vld [vmem:[%s212 + $0xa8] sm:$0xff]
        %v244 = vld [vmem:[%s212 + $0xb0] sm:$0xff]
        %v245 = vld [vmem:[%s212 + $0xb8] sm:$0xff]
        %v246 = vld [vmem:[%s212 + $0xc0] sm:$0xff]
        %v247 = vld [vmem:[%s212 + $0xc8] sm:$0xff]
        %v248 = vld [vmem:[%s212 + $0xd0] sm:$0xff]
        %v249 = vld [vmem:[%s212 + $0xd8] sm:$0xff]
        %v250 = vld [vmem:[%s212 + $0xe0] sm:$0xff]
        %v251 = vld [vmem:[%s212 + $0xe8] sm:$0xff]
        %v252 = vld [vmem:[%s212 + $0xf0] sm:$0xff]
        %v253 = vld [vmem:[%s212 + $0xf8] sm:$0xff]
        %v254 = vld [vmem:[%s212 + $0x100] sm:$0xff]
        %v255 = vld [vmem:[%s212 + $0x108] sm:$0xff]
        %v256 = vld [vmem:[%s212 + $0x110] sm:$0xff]
        %v257 = vld [vmem:[%s212 + $0x118] sm:$0xff]
        %v258 = vld [vmem:[%s212 + $0x120] sm:$0xff]
        %v259 = vld [vmem:[%s212 + $0x128] sm:$0xff]
        %v260 = vld [vmem:[%s212 + $0x130] sm:$0xff]
        %v261 = vld [vmem:[%s212 + $0x138] sm:$0xff]
        %v262 = vld [vmem:[%s212 + $0x140] sm:$0xff]
        %v263 = vld [vmem:[%s212 + $0x148] sm:$0xff]
        %v264 = vld [vmem:[%s212 + $0x150] sm:$0xff]
        %v265 = vld [vmem:[%s212 + $0x158] sm:$0xff]
        %v266 = vld [vmem:[%s212 + $0x160] sm:$0xff]
        %v267 = vld [vmem:[%s212 + $0x168] sm:$0xff]
        %v268 = vld [vmem:[%s212 + $0x170] sm:$0xff]
        %v269 = vld [vmem:[%s212 + $0x178] sm:$0xff]
        %v270 = vld [vmem:[%s212 + $0x180] sm:$0xff]
        %v271 = vld [vmem:[%s212 + $0x188] sm:$0xff]
        %v272 = vld [vmem:[%s212 + $0x190] sm:$0xff]
        %v273 = vld [vmem:[%s212 + $0x198] sm:$0xff]
        %v274 = vld [vmem:[%s212 + $0x1a0] sm:$0x1f]
        %v275 = vld [vmem:[%s212 + $0x1a8] sm:$0x1f]
        %v276 = vld [vmem:[%s212 + $0x1b0] sm:$0x1f]
        %v277 = vld [vmem:[%s212 + $0x1b8] sm:$0x1f]
        %vm278 = vcmask 891904
        %v280 = vsel %vm278, %v220, 0
        %v283 = vsel %vm278, %v221, 0
        %vm285 = vcmask 1044480
        %v287 = vsel %vm285, %v274, 0
        %v290 = vsel %vm285, %v275, 0
        %v293 = vsel %vm285, %v276, 0
        %v296 = vsel %vm285, %v277, 0
        %298 = vmatprep.subr.mxu0 0.0
        %299 = vmatpush1.msra.mxu0 0.0
        %300 = vmatprep.subr.mxu0 0.0
        %301 = vmatpush1.msra.mxu0 0.0
        %302 = vmatprep.subr.mxu0 %v290
        %303 = vmatpush1.msra.mxu0 %v287
        %304 = vmatprep.subr.mxu0 %v271
        %305 = vmatpush1.msra.mxu0 %v270
        %306 = vmatprep.subr.mxu0 %v267
        %307 = vmatpush1.msra.mxu0 %v266
        %308 = vmatprep.subr.mxu0 %v263
        %309 = vmatpush1.msra.mxu0 %v262
        %310 = vmatprep.subr.mxu0 %v259
        %311 = vmatpush1.msra.mxu0 %v258
        %312 = vmatprep.subr.mxu0 %v255
        %313 = vmatpush1.msra.mxu0 %v254
        %314 = vmatprep.subr.mxu0 %v251
        %315 = vmatpush1.msra.mxu0 %v250
        %316 = vmatprep.subr.mxu0 %v247
        %317 = vmatpush1.msra.mxu0 %v246
        %318 = vmatprep.subr.mxu0 %v243
        %319 = vmatpush1.msra.mxu0 %v242
        %320 = vmatprep.subr.mxu0 %v239
        %321 = vmatpush1.msra.mxu0 %v238
        %322 = vmatprep.subr.mxu0 %v235
        %323 = vmatpush1.msra.mxu0 %v234
        %324 = vmatprep.subr.mxu0 %v231
        %325 = vmatpush1.msra.mxu0 %v230
        %326 = vmatprep.subr.mxu0 %v227
        %327 = vmatpush1.msra.mxu0 %v226
        %328 = vmatprep.subr.mxu0 %v223
        %329 = vmatpush1.msra.mxu0 %v222
        %330 = vmatprep.subr.mxu0 0.0
        %331 = vmatpush2.msra.mxu0 0.0
        %332 = vmatprep.subr.mxu0 0.0
        %333 = vmatpush2.msra.mxu0 0.0
        %334 = vmatprep.subr.mxu0 0.0
        %335 = vmatpush2.msra.mxu0 0.0
        %336 = vmatprep.subr.mxu0 0.0
        %337 = vmatpush2.msra.mxu0 0.0
        %338 = vmatprep.subr.mxu0 0.0
        %339 = vmatpush2.msra.mxu0 0.0
        %340 = vmatprep.subr.mxu0 0.0
        %341 = vmatpush2.msra.mxu0 0.0
        %342 = vmatprep.subr.mxu0 0.0
        %343 = vmatpush2.msra.mxu0 0.0
        %344 = vmatprep.subr.mxu0 0.0
        %345 = vmatpush2.msra.mxu0 0.0
        %346 = vmatprep.subr.mxu0 0.0
        %347 = vmatpush2.msra.mxu0 0.0
        %348 = vmatprep.subr.mxu0 0.0
        %349 = vmatpush2.msra.mxu0 0.0
        %350 = vmatprep.subr.mxu0 0.0
        %351 = vmatpush2.msra.mxu0 0.0
        %352 = vmatprep.subr.mxu0 0.0
        %353 = vmatpush2.msra.mxu0 0.0
        %354 = vmatprep.subr.mxu0 0.0
        %355 = vmatpush2.msra.mxu0 0.0
        %356 = vmatprep.subr.mxu0 0.0
        %357 = vmatpush2.msra.mxu0 0.0
        %358 = vmatprep.subr.mxu0 0.0
        %359 = vmatpush2.msra.mxu0 0.0
        %360 = vmatprep.subr.mxu0 0.0
        %361 = vmatpush2.msra.mxu0 0.0
        %362 = vmatprep.mubr.f32.mxu0 0.0
        %363 = vmatmul.mubr.f32.gmra.mxu0 %v280
        %v364 = vpop.f32.mrf.mxu0
        %v365 = vadd.f32 0.0, %v364
        %v366 = vpop.f32.mrf.mxu0
        %v367 = vadd.f32 0.0, %v366
        %368 = vmatprep.mubr.f32.mxu0 0.0
        %369 = vmatmul.mubr.f32.gmra.mxu0 %v283
        %v370 = vpop.f32.mrf.mxu0
        %v371 = vadd.f32 0.0, %v370
        %v372 = vpop.f32.mrf.mxu0
        %v373 = vadd.f32 0.0, %v372
        %374 = vdwg.mxu0
        %375 = vmatprep.subr.mxu0 0.0
        %376 = vmatpush1.msra.mxu0 0.0
        %377 = vmatprep.subr.mxu0 0.0
        %378 = vmatpush1.msra.mxu0 0.0
        %379 = vmatprep.subr.mxu0 %v296
        %380 = vmatpush1.msra.mxu0 %v293
        %381 = vmatprep.subr.mxu0 %v273
        %382 = vmatpush1.msra.mxu0 %v272
        %383 = vmatprep.subr.mxu0 %v269
        %384 = vmatpush1.msra.mxu0 %v268
        %385 = vmatprep.subr.mxu0 %v265
        %386 = vmatpush1.msra.mxu0 %v264
        %387 = vmatprep.subr.mxu0 %v261
        %388 = vmatpush1.msra.mxu0 %v260
        %389 = vmatprep.subr.mxu0 %v257
        %390 = vmatpush1.msra.mxu0 %v256
        %391 = vmatprep.subr.mxu0 %v253
        %392 = vmatpush1.msra.mxu0 %v252
        %393 = vmatprep.subr.mxu0 %v249
        %394 = vmatpush1.msra.mxu0 %v248
        %395 = vmatprep.subr.mxu0 %v245
        %396 = vmatpush1.msra.mxu0 %v244
        %397 = vmatprep.subr.mxu0 %v241
        %398 = vmatpush1.msra.mxu0 %v240
        %399 = vmatprep.subr.mxu0 %v237
        %400 = vmatpush1.msra.mxu0 %v236
        %401 = vmatprep.subr.mxu0 %v233
        %402 = vmatpush1.msra.mxu0 %v232
        %403 = vmatprep.subr.mxu0 %v229
        %404 = vmatpush1.msra.mxu0 %v228
        %405 = vmatprep.subr.mxu0 %v225
        %406 = vmatpush1.msra.mxu0 %v224
        %407 = vmatprep.subr.mxu0 0.0
        %408 = vmatpush2.msra.mxu0 0.0
        %409 = vmatprep.subr.mxu0 0.0
        %410 = vmatpush2.msra.mxu0 0.0
        %411 = vmatprep.subr.mxu0 0.0
        %412 = vmatpush2.msra.mxu0 0.0
        %413 = vmatprep.subr.mxu0 0.0
        %414 = vmatpush2.msra.mxu0 0.0
        %415 = vmatprep.subr.mxu0 0.0
        %416 = vmatpush2.msra.mxu0 0.0
        %417 = vmatprep.subr.mxu0 0.0
        %418 = vmatpush2.msra.mxu0 0.0
        %419 = vmatprep.subr.mxu0 0.0
        %420 = vmatpush2.msra.mxu0 0.0
        %421 = vmatprep.subr.mxu0 0.0
        %422 = vmatpush2.msra.mxu0 0.0
        %423 = vmatprep.subr.mxu0 0.0
        %424 = vmatpush2.msra.mxu0 0.0
        %425 = vmatprep.subr.mxu0 0.0
        %426 = vmatpush2.msra.mxu0 0.0
        %427 = vmatprep.subr.mxu0 0.0
        %428 = vmatpush2.msra.mxu0 0.0
        %429 = vmatprep.subr.mxu0 0.0
        %430 = vmatpush2.msra.mxu0 0.0
        %431 = vmatprep.subr.mxu0 0.0
        %432 = vmatpush2.msra.mxu0 0.0
        %433 = vmatprep.subr.mxu0 0.0
        %434 = vmatpush2.msra.mxu0 0.0
        %435 = vmatprep.subr.mxu0 0.0
        %436 = vmatpush2.msra.mxu0 0.0
        %437 = vmatprep.subr.mxu0 0.0
        %438 = vmatpush2.msra.mxu0 0.0
        %439 = vmatprep.mubr.f32.mxu0 0.0
        %440 = vmatmul.mubr.f32.gmra.mxu0 %v280
        %v441 = vpop.f32.mrf.mxu0
        %v442 = vadd.f32 0.0, %v441
        %v443 = vpop.f32.mrf.mxu0
        %v444 = vadd.f32 0.0, %v443
        %445 = vmatprep.mubr.f32.mxu0 0.0
        %446 = vmatmul.mubr.f32.gmra.mxu0 %v283
        %v447 = vpop.f32.mrf.mxu0
        %v448 = vadd.f32 0.0, %v447
        %v449 = vpop.f32.mrf.mxu0
        %v450 = vadd.f32 0.0, %v449
        %451 = vdwg.mxu0
        %v452 = vld [vmem:[%s218] sm:$0xff]
        %v453 = vld [vmem:[%s218 + $0x8] sm:$0xff]
        %455 = vset.pattern.permute.xlu0 0
        %456 = vperm.xlu0 %455, %v452
        %v457 = vpop.permute.xlu0 %456
        %460 = vset.pattern.permute.xlu0 0
        %461 = vperm.xlu0 %460, %v453
        %v462 = vpop.permute.xlu0 %461
        %v464 = vmul.f32 %v365, %v457
        %v465 = vmul.f32 %v367, %v457
        %v466 = vmul.f32 %v442, %v457
        %v467 = vmul.f32 %v444, %v457
        %v468 = vmul.f32 %v371, %v462
        %v469 = vmul.f32 %v373, %v462
        %v470 = vmul.f32 %v448, %v462
        %v471 = vmul.f32 %v450, %v462
        %472 = vst [vmem:[%s203] sm:$0xff] %v464
        %473 = vst [vmem:[%s203 + $0x8] sm:$0xff] %v465
        %474 = vst [vmem:[%s203 + $0x10] sm:$0xff] %v466
        %475 = vst [vmem:[%s203 + $0x18] sm:$0xff] %v467
        %476 = vst [vmem:[%s203 + $0x20] sm:$0xff] %v468
        %477 = vst [vmem:[%s203 + $0x28] sm:$0xff] %v469
        %478 = vst [vmem:[%s203 + $0x30] sm:$0xff] %v470
        %479 = vst [vmem:[%s203 + $0x38] sm:$0xff] %v471
        %s480 = sand.u32 %s114, 1
        %s481 = scalar_lea.sflag [#allocation3], %s480
        %s482 = sand.u32 %s114, 1
        %s483 = smul.addr %s482, 64
        %s484 = scalar_lea.vmem [#allocation2], %s483
        // Predicated region
        $region33: #{tpu_custom_call.1} parent=31 // pred_check
          %p485 = pneg %p124
        $region34: #{tpu_custom_call.1} parent=31 // pred_check_branch
          %487 = sbr.rel (%p485) target = $region36
        $region35: #{tpu_custom_call.1} parent=31 // pred_region
          %s488 = smul.u32 4, %s22
          %s490 = ssub.s32 1024, 1024
          %491 = vsyncadd %s481, %s490
          %s492 = smul.addr %s21, 8
          %s493 = sadd.s32 %s488, %s492
          %s494 = smul.addr %s493, 128
          %s495 = scalar_lea.hbm %s3, %s494
          %s496 = sshll.u32 %s484, 4
          %s497 = int_to_ptr.vmem [resolvable:$true] %s496
          %502 = dma.vmem_to_hbm [thread:$0]  %s497, 1024, %s495, %s481, 512, 512, 32
        $region36: #{tpu_custom_call.1} parent=31 // pred_fallthru
          _
      $region32: #{tpu_custom_call.1} parent=5 // pred_fallthru
        _
      %p503 = scmp.le.s32.totalorder 2, %s12
      // Predicated region
      $region37: #{tpu_custom_call.1} parent=5 // pred_check
        %p504 = pneg %p503
      $region38: #{tpu_custom_call.1} parent=5 // pred_check_branch
        %506 = sbr.rel (%p504) target = $region40
      $region39: #{tpu_custom_call.1} parent=5 // pred_region
        %s507 = ssub.s32 %s12, 2
        // Predicated region
        $region41: #{tpu_custom_call.1} parent=39 // pred_check
          %p508 = pneg %p130
        $region42: #{tpu_custom_call.1} parent=39 // pred_check_branch
          %510 = sbr.rel (%p508) target = $region44
        $region43: #{tpu_custom_call.1} parent=39 // pred_region
          %s511 = sand.u32 %s115, 1
          %s512 = scalar_lea.sflag [#allocation3], %s511
          %s513 = sand.u32 %s115, 1
          %s514 = smul.addr %s513, 64
          %s515 = scalar_lea.vmem [#allocation2], %s514
          %516 = dma.done %s512, 1024
        $region44: #{tpu_custom_call.1} parent=39 // pred_fallthru
          _
      $region40: #{tpu_custom_call.1} parent=5 // pred_fallthru
        _
    $region6: #{tpu_custom_call.1} parent=1 // loop_footer
      %s16 = sadd.s32 1, %s12
    $region7: #{tpu_custom_call.1} parent=1 // loop_footer_branch
      %11 = sbr.rel target = $region3
    $region8: #{tpu_custom_call.1} parent=1 // loop_exit
      _
    %517 = vsyncpa [#allocation3], 1
    %s518 = scalar_lea.sflag [#allocation3], 1
    %519 = vsyncpa %s518, 1

</llo_original>
